<compile_context>
chip_gen: v6e
topology: v6e:2x2x1
jax: 0.10.0
libtpu: 0.0.40
codegen_flags: <defaults>
</compile_context>

<pallas_src>
import functools

import jax
import jax.numpy as jnp
import numpy as np
from jax.experimental import pallas as pl
from jax.experimental.pallas import tpu as pltpu


def _round_up(x, m):
    return -(-x // m) * m


def _concrf_kernel(w_ref, b_ref, p_ref, o_ref):
    """One grid step == one lane-dense tile of `tm` output pixels.

    w_ref : (Cout_pad, R)   f32 VMEM  flattened conv weight (zero-padded rows)
    b_ref : (Cout_pad, 1)   f32 VMEM  bias column (zero-padded rows)
    p_ref : (R, tm)         f32 VMEM  im2col patches, batch*spatial on lanes
    o_ref : (Cout_pad, tm)  f32 VMEM  output tile
    """
    y = jnp.dot(w_ref[...], p_ref[...],
                preferred_element_type=jnp.float32,
                precision=jax.lax.Precision.HIGHEST)
    o_ref[...] = jax.nn.sigmoid(y + b_ref[...]).astype(o_ref.dtype)


def concrf_forward(x_nchw, weight, bias, *, padding=None, strides=1,
                   block_m=None):
    """Forward pass equivalent to ConCRF: sigmoid(conv2d(x)).

    x_nchw : (N, Cin, H, W)       float32
    weight : (Cout, Cin, KH, KW)  float32   (PyTorch Conv2d layout)
    bias   : (Cout,)              float32
    returns (N, Cout, Ho, Wo)     float32
    """
    # TODO(synk): strides > 1 not implemented (module default is stride=1).
    assert strides == 1, "only stride=1 (the module default) is implemented"
    N, Cin, H, W = x_nchw.shape
    Cout, Cin_w, KH, KW = weight.shape
    assert Cin == Cin_w
    pad = (KH // 2) if padding is None else padding
    Ho = H + 2 * pad - KH + 1
    Wo = W + 2 * pad - KW + 1
    R = Cin * KH * KW
    M = N * Ho * Wo
    Cout_pad = _round_up(Cout, 8)        # sublane-align the MXU output rows

    # --- im2col directly in (R, M) order: transpose the (KH*KW x smaller)
    #     input first instead of relayouting the 9x-expanded patch tensor. ---
    x_cnhw = jnp.transpose(x_nchw, (1, 0, 2, 3))                 # (Cin,N,H,W)
    xp = jnp.pad(x_cnhw, ((0, 0), (0, 0), (pad, pad), (pad, pad)))
    cols = [xp[:, :, kh:kh + Ho, kw:kw + Wo]                     # (Cin,N,Ho,Wo)
            for kh in range(KH) for kw in range(KW)]
    patches = jnp.stack(cols, axis=1).reshape(R, M)   # r = ci*KH*KW + kh*KW + kw
    # TODO(synk): fuse im2col into the pallas_call (per-tap contraction on a
    # pre-padded x) so the 9x-expanded patch matrix never round-trips HBM.

    # Lane-dense tiling of the folded batch*spatial axis (multiple of 128).
    # Single grid step for small problems; 1024-lane tiles at scale.
    if block_m is None:
        block_m = min(_round_up(M, 128), 1024)
    block_m = _round_up(max(block_m, 128), 128)
    m_pad = _round_up(M, block_m)
    if m_pad != M:
        patches = jnp.pad(patches, ((0, 0), (0, m_pad - M)))

    w2d = jnp.pad(weight.reshape(Cout, R), ((0, Cout_pad - Cout), (0, 0)))
    b2d = jnp.pad(bias.reshape(Cout, 1), ((0, Cout_pad - Cout), (0, 0)))

    cost = pl.CostEstimate(
        flops=2 * Cout * R * M,
        transcendentals=Cout * M,
        bytes_accessed=4 * ((R + Cout) * M + Cout * R + Cout),
    )

    out2d = pl.pallas_call(
        _concrf_kernel,
        out_shape=jax.ShapeDtypeStruct((Cout_pad, m_pad), x_nchw.dtype),
        grid_spec=pltpu.PrefetchScalarGridSpec(
            num_scalar_prefetch=0,
            grid=(m_pad // block_m,),
            in_specs=[
                pl.BlockSpec((Cout_pad, R), lambda i: (0, 0)),   # weight (VMEM)
                pl.BlockSpec((Cout_pad, 1), lambda i: (0, 0)),   # bias   (VMEM)
                pl.BlockSpec((R, block_m), lambda i: (0, i)),    # patches
            ],
            out_specs=pl.BlockSpec((Cout_pad, block_m), lambda i: (0, i)),
        ),
        compiler_params=pltpu.CompilerParams(
            dimension_semantics=("parallel",)),
        cost_estimate=cost,
    )(w2d, b2d, patches)

    out = out2d[:Cout, :M].reshape(Cout, N, Ho, Wo)
    return jnp.transpose(out, (1, 0, 2, 3))   # back to NCHW


def _reference_forward(x_nchw, weight, bias, *, padding):
    """Pure-JAX reference (lax conv) for correctness checking."""
    y = jax.lax.conv_general_dilated(
        x_nchw, weight,
        window_strides=(1, 1),
        padding=[(padding, padding), (padding, padding)],
        dimension_numbers=("NCHW", "OIHW", "NCHW"),
        precision=jax.lax.Precision.HIGHEST,
    )
    y = y + bias.reshape(1, -1, 1, 1)
    return jax.nn.sigmoid(y)


if __name__ == "__main__":
    # Small shapes consistent with the module: batch=2, in_channels=4,
    # num_classes=4, spatial=16x16, kernel_size=3, stride=1, padding=1.
    N, Cin, H, W = 2, 4, 16, 16
    num_classes, K = 4, 3

    key = jax.random.PRNGKey(0)
    kx, kw, kb = jax.random.split(key, 3)

    x = jax.random.normal(kx, (N, Cin, H, W), dtype=jnp.float32)

    # Deterministic "PyTorch-style" Conv2d init: U(-bound, bound),
    # bound = 1/sqrt(fan_in), fan_in = Cin * K * K.
    fan_in = Cin * K * K
    bound = 1.0 / np.sqrt(fan_in)
    weight = jax.random.uniform(kw, (num_classes, Cin, K, K),
                                minval=-bound, maxval=bound,
                                dtype=jnp.float32)
    bias = jax.random.uniform(kb, (num_classes,),
                              minval=-bound, maxval=bound,
                              dtype=jnp.float32)

    out = concrf_forward(x, weight, bias)
    out = jax.block_until_ready(out)

    ref = jax.block_until_ready(_reference_forward(x, weight, bias,
                                                   padding=K // 2))
    np.testing.assert_allclose(np.asarray(out), np.asarray(ref),
                               rtol=1e-5, atol=1e-5)

    print("KERNEL_OK")
</pallas_src>

<mosaic_0001>
module attributes {stable_mosaic.version = 11 : i64} {
  func.func @_concrf_kernel(%arg0: i32, %arg1: memref<8x36xf32, #tpu.memory_space<vmem>>, %arg2: memref<8x1xf32, #tpu.memory_space<vmem>>, %arg3: memref<36x512xf32, #tpu.memory_space<vmem>>, %arg4: memref<8x512xf32, #tpu.memory_space<vmem>>) attributes {dimension_semantics = [#tpu.dimension_semantics<parallel>], iteration_bounds = array<i64: 1>, scalar_prefetch = 0 : i64, scratch_operands = 0 : i64, tpu.core_type = #tpu.core_type<tc>, window_params = [{pipeline_mode = #tpu.pipeline_mode<synchronous>, transform_indices = @transform_0, window_bounds = array<i64: 8, 36>}, {pipeline_mode = #tpu.pipeline_mode<synchronous>, transform_indices = @transform_1, window_bounds = array<i64: 8, 1>}, {transform_indices = @transform_2, window_bounds = array<i64: 36, 512>}, {transform_indices = @transform_3, window_bounds = array<i64: 8, 512>}]} {
    %c0 = arith.constant 0 : index
    %c0_0 = arith.constant 0 : index
    %0 = vector.load %arg1[%c0, %c0_0] : memref<8x36xf32, #tpu.memory_space<vmem>>, vector<8x36xf32>
    %c0_1 = arith.constant 0 : index
    %c0_2 = arith.constant 0 : index
    %1 = vector.load %arg3[%c0_1, %c0_2] : memref<36x512xf32, #tpu.memory_space<vmem>>, vector<36x512xf32>
    %cst = arith.constant dense<0.000000e+00> : vector<8x512xf32>
    %2 = tpu.matmul %0, %1, %cst {dimension_numbers = #tpu.dot_dimension_numbers<[1], [0], [0], [1], [0, 0, 1, 1], [], []>, precision = #tpu.contract_precision<fp32>} : vector<8x36xf32>, vector<36x512xf32>, vector<8x512xf32> -> vector<8x512xf32>
    %c0_3 = arith.constant 0 : index
    %c0_4 = arith.constant 0 : index
    %3 = vector.load %arg2[%c0_3, %c0_4] : memref<8x1xf32, #tpu.memory_space<vmem>>, vector<8x1xf32>
    %4 = vector.broadcast %3 : vector<8x1xf32> to vector<8x512xf32>
    %5 = arith.addf %2, %4 : vector<8x512xf32>
    %6 = arith.negf %5 : vector<8x512xf32>
    %7 = math.exp %6 : vector<8x512xf32>
    %cst_5 = arith.constant 1.000000e+00 : f32
    %8 = vector.broadcast %cst_5 : f32 to vector<8x512xf32>
    %9 = arith.addf %8, %7 : vector<8x512xf32>
    %10 = arith.divf %8, %9 : vector<8x512xf32>
    %c0_6 = arith.constant 0 : index
    %c0_7 = arith.constant 0 : index
    %11 = vector.load %arg4[%c0_6, %c0_7] : memref<8x512xf32, #tpu.memory_space<vmem>>, vector<8x512xf32>
    tpu.vector_store %arg4[%c0_6, %c0_7], %10 {strides = array<i32>} : memref<8x512xf32, #tpu.memory_space<vmem>>, vector<8x512xf32>,
    return
  }
  func.func @transform_0(%arg0: i32) -> (i32, i32) {
    %c0_i32 = arith.constant 0 : i32
    %c0_i32_0 = arith.constant 0 : i32
    %c0_i32_1 = arith.constant 0 : i32
    return %c0_i32, %c0_i32_0 : i32, i32
  }
  func.func @transform_1(%arg0: i32) -> (i32, i32) {
    %c0_i32 = arith.constant 0 : i32
    %c0_i32_0 = arith.constant 0 : i32
    %c0_i32_1 = arith.constant 0 : i32
    return %c0_i32, %c0_i32_0 : i32, i32
  }
  func.func @transform_2(%arg0: i32) -> (i32, i32) {
    %c0_i32 = arith.constant 0 : i32
    %c0_i32_0 = arith.constant 0 : i32
    return %c0_i32, %arg0 : i32, i32
  }
  func.func @transform_3(%arg0: i32) -> (i32, i32) {
    %c0_i32 = arith.constant 0 : i32
    %c0_i32_0 = arith.constant 0 : i32
    return %c0_i32, %arg0 : i32, i32
  }
}

</mosaic_0001>

<llo_original>
// kernel: tpu_custom_call.1
$region0: #{tpu_custom_call.1}
  #allocation0 [shape = 'u32[]', space=smem, size = 0x4, offset = 0x4, fixed_abs, tag = 'smem constant byte address 0x4 - core index']
  #allocation1 [shape = 'u32[144,128]{1,0:T(1,128)}', space=vmem, size = 0x12000, scoped, tag = 'internal scratch']
  %s0 = inlined_call_operand.vmem [shape: f32[8,36], index: 0, kind: input, shape index: {}]
  %s1 = inlined_call_operand.vmem [shape: f32[8,1], index: 1, kind: input, shape index: {}]
  %s2 = inlined_call_operand.hbm [shape: f32[36,512], index: 2, kind: input, shape index: {}]
  %s3 = inlined_call_operand.hbm [shape: f32[8,512], index: 3, kind: output, shape index: {}]
  %s4 = sld [smem:[#allocation0]]
  $region26: #{tpu_custom_call.1} parent=0
    _
  %s6 = ssub.s32 1, %s4
  %s7 = scalar_select 0, %s6, %s4
  $region1: #{tpu_custom_call.1} parent=0
    #allocation2 [shape = 'u8[81920]{0}', space=vmem, size = 0x14000, scoped, tag = 'input window, operand 2, single buffered']
    #allocation3 [shape = 's32[1]{0}', space=sflag, size = 0x4, scoped, tag = 'scoped memory for tpu_custom_call.1']
    #allocation4 [shape = 's32[1]{0}', space=sflag, size = 0x4, scoped, tag = 'scoped memory for tpu_custom_call.1']
    #allocation5 [shape = 'u8[16384]{0}', space=vmem, size = 0x4000, scoped, tag = 'output window, operand 0, single buffered']
    %8 = vsyncpa [#allocation3], 0
    %9 = vsyncpa [#allocation4], 0
    // Predicated region
    $region2: #{tpu_custom_call.1} parent=1 // pred_check
      _
    $region3: #{tpu_custom_call.1} parent=1 // pred_check_branch
      %11 = sbr.rel (0) target = $region5
    $region4: #{tpu_custom_call.1} parent=1 // pred_region
      _
    $region5: #{tpu_custom_call.1} parent=1 // pred_fallthru
      _
    // Predicated region
    $region6: #{tpu_custom_call.1} parent=1 // pred_check
      _
    $region7: #{tpu_custom_call.1} parent=1 // pred_check_branch
      %13 = sbr.rel (0) target = $region9
    $region8: #{tpu_custom_call.1} parent=1 // pred_region
      _
    $region9: #{tpu_custom_call.1} parent=1 // pred_fallthru
      _
    // Predicated region
    $region10: #{tpu_custom_call.1} parent=1 // pred_check
      _
    $region11: #{tpu_custom_call.1} parent=1 // pred_check_branch
      %15 = sbr.rel (0) target = $region13
    $region12: #{tpu_custom_call.1} parent=1 // pred_region
      %s17 = ssub.s32 2560, 2560
      %18 = vsyncadd [#allocation3], %s17
      %s19 = sshll.u32 [#allocation2], 4
      %s20 = int_to_ptr.vmem [resolvable:$true] %s19
      %25 = dma.hbm_to_vmem [thread:$0]  %s2, 2560, %s20, [#allocation3], 512, 512, 32
    $region13: #{tpu_custom_call.1} parent=1 // pred_fallthru
      _
    // Predicated region
    $region14: #{tpu_custom_call.1} parent=1 // pred_check
      _
    $region15: #{tpu_custom_call.1} parent=1 // pred_check_branch
      %27 = sbr.rel (0) target = $region17
    $region16: #{tpu_custom_call.1} parent=1 // pred_region
      %28 = dma.done [#allocation3], 2560
    $region17: #{tpu_custom_call.1} parent=1 // pred_fallthru
      _
    %v29 = vld [vmem:[%s0] sm:$0xff]
    %v30 = vld [vmem:[#allocation2] sm:$0xff]
    %v31 = vld [vmem:[#allocation2 + $0x8] sm:$0xff]
    %v32 = vld [vmem:[#allocation2 + $0x10] sm:$0xff]
    %v33 = vld [vmem:[#allocation2 + $0x18] sm:$0xff]
    %v34 = vld [vmem:[#allocation2 + $0x20] sm:$0xff]
    %v35 = vld [vmem:[#allocation2 + $0x28] sm:$0xff]
    %v36 = vld [vmem:[#allocation2 + $0x30] sm:$0xff]
    %v37 = vld [vmem:[#allocation2 + $0x38] sm:$0xff]
    %v38 = vld [vmem:[#allocation2 + $0x40] sm:$0xff]
    %v39 = vld [vmem:[#allocation2 + $0x48] sm:$0xff]
    %v40 = vld [vmem:[#allocation2 + $0x50] sm:$0xff]
    %v41 = vld [vmem:[#allocation2 + $0x58] sm:$0xff]
    %v42 = vld [vmem:[#allocation2 + $0x60] sm:$0xff]
    %v43 = vld [vmem:[#allocation2 + $0x68] sm:$0xff]
    %v44 = vld [vmem:[#allocation2 + $0x70] sm:$0xff]
    %v45 = vld [vmem:[#allocation2 + $0x78] sm:$0xff]
    %v46 = vld [vmem:[#allocation2 + $0x80] sm:$0xf]
    %v47 = vld [vmem:[#allocation2 + $0x88] sm:$0xf]
    %v48 = vld [vmem:[#allocation2 + $0x90] sm:$0xf]
    %v49 = vld [vmem:[#allocation2 + $0x98] sm:$0xf]
    %v50 = vld [vmem:[%s1] sm:$0xff]
    %52 = vset.pattern.permute.xlu0 0
    %53 = vperm.xlu0 %52, %v50
    %v54 = vpop.permute.xlu0 %53
    %vm56 = vcmask 293888
    %v58 = vsel %vm56, %v29, 0
    %vm60 = vcmask 1043456
    %v62 = vsel %vm60, %v46, 0
    %v65 = vsel %vm60, %v47, 0
    %v68 = vsel %vm60, %v48, 0
    %v71 = vsel %vm60, %v49, 0
    %73 = vmatprep.subr.mxu0 0.0
    %74 = vmatpush1.msra.mxu0 0.0
    %75 = vmatprep.subr.mxu0 0.0
    %76 = vmatpush1.msra.mxu0 0.0
    %77 = vmatprep.subr.mxu0 0.0
    %78 = vmatpush1.msra.mxu0 0.0
    %79 = vmatprep.subr.mxu0 0.0
    %80 = vmatpush1.msra.mxu0 0.0
    %81 = vmatprep.subr.mxu0 0.0
    %82 = vmatpush1.msra.mxu0 0.0
    %83 = vmatprep.subr.mxu0 0.0
    %84 = vmatpush1.msra.mxu0 0.0
    %85 = vmatprep.subr.mxu0 0.0
    %86 = vmatpush1.msra.mxu0 0.0
    %87 = vmatprep.subr.mxu0 0.0
    %88 = vmatpush1.msra.mxu0 0.0
    %89 = vmatprep.subr.mxu0 0.0
    %90 = vmatpush1.msra.mxu0 0.0
    %91 = vmatprep.subr.mxu0 0.0
    %92 = vmatpush1.msra.mxu0 0.0
    %93 = vmatprep.subr.mxu0 0.0
    %94 = vmatpush1.msra.mxu0 0.0
    %v95 = vand.u32 %v65, 4294901760
    %96 = vmatprep.subr.mxu0 %v95
    %v97 = vand.u32 %v62, 4294901760
    %98 = vmatpush1.msra.mxu0 %v97
    %v99 = vand.u32 %v43, 4294901760
    %100 = vmatprep.subr.mxu0 %v99
    %v101 = vand.u32 %v42, 4294901760
    %102 = vmatpush1.msra.mxu0 %v101
    %v103 = vand.u32 %v39, 4294901760
    %104 = vmatprep.subr.mxu0 %v103
    %v105 = vand.u32 %v38, 4294901760
    %106 = vmatpush1.msra.mxu0 %v105
    %v107 = vand.u32 %v35, 4294901760
    %108 = vmatprep.subr.mxu0 %v107
    %v109 = vand.u32 %v34, 4294901760
    %110 = vmatpush1.msra.mxu0 %v109
    %v111 = vand.u32 %v31, 4294901760
    %112 = vmatprep.subr.mxu0 %v111
    %v113 = vand.u32 %v30, 4294901760
    %114 = vmatpush1.msra.mxu0 %v113
    %115 = vmatprep.subr.mxu0 0.0
    %116 = vmatpush2.msra.mxu0 0.0
    %117 = vmatprep.subr.mxu0 0.0
    %118 = vmatpush2.msra.mxu0 0.0
    %119 = vmatprep.subr.mxu0 0.0
    %120 = vmatpush2.msra.mxu0 0.0
    %121 = vmatprep.subr.mxu0 0.0
    %122 = vmatpush2.msra.mxu0 0.0
    %123 = vmatprep.subr.mxu0 0.0
    %124 = vmatpush2.msra.mxu0 0.0
    %125 = vmatprep.subr.mxu0 0.0
    %126 = vmatpush2.msra.mxu0 0.0
    %127 = vmatprep.subr.mxu0 0.0
    %128 = vmatpush2.msra.mxu0 0.0
    %129 = vmatprep.subr.mxu0 0.0
    %130 = vmatpush2.msra.mxu0 0.0
    %131 = vmatprep.subr.mxu0 0.0
    %132 = vmatpush2.msra.mxu0 0.0
    %133 = vmatprep.subr.mxu0 0.0
    %134 = vmatpush2.msra.mxu0 0.0
    %135 = vmatprep.subr.mxu0 0.0
    %136 = vmatpush2.msra.mxu0 0.0
    %137 = vmatprep.subr.mxu0 0.0
    %138 = vmatpush2.msra.mxu0 0.0
    %139 = vmatprep.subr.mxu0 0.0
    %140 = vmatpush2.msra.mxu0 0.0
    %141 = vmatprep.subr.mxu0 0.0
    %142 = vmatpush2.msra.mxu0 0.0
    %143 = vmatprep.subr.mxu0 0.0
    %144 = vmatpush2.msra.mxu0 0.0
    %145 = vmatprep.subr.mxu0 0.0
    %146 = vmatpush2.msra.mxu0 0.0
    %147 = vmatprep.mubr.f32.mxu0 0.0
    %v148 = vand.u32 %v58, 4294901760
    %v149 = vsub.f32 %v58, %v148
    %v150 = vand.u32 %v149, 4294901760
    %v151 = vsub.f32 %v149, %v150
    %v152 = vand.u32 %v151, 4294901760
    %153 = vmatmul.mubr.f32.gmra.mxu0 %v152
    %v154 = vpop.f32.mrf.mxu0
    %v155 = vadd.f32 %v54, %v154
    %v156 = vpop.f32.mrf.mxu0
    %v157 = vadd.f32 %v54, %v156
    %158 = vdwg.mxu0
    %159 = vmatprep.subr.mxu0 0.0
    %160 = vmatpush1.msra.mxu0 0.0
    %161 = vmatprep.subr.mxu0 0.0
    %162 = vmatpush1.msra.mxu0 0.0
    %163 = vmatprep.subr.mxu0 0.0
    %164 = vmatpush1.msra.mxu0 0.0
    %165 = vmatprep.subr.mxu0 0.0
    %166 = vmatpush1.msra.mxu0 0.0
    %167 = vmatprep.subr.mxu0 0.0
    %168 = vmatpush1.msra.mxu0 0.0
    %169 = vmatprep.subr.mxu0 0.0
    %170 = vmatpush1.msra.mxu0 0.0
    %171 = vmatprep.subr.mxu0 0.0
    %172 = vmatpush1.msra.mxu0 0.0
    %173 = vmatprep.subr.mxu0 0.0
    %174 = vmatpush1.msra.mxu0 0.0
    %175 = vmatprep.subr.mxu0 0.0
    %176 = vmatpush1.msra.mxu0 0.0
    %177 = vmatprep.subr.mxu0 0.0
    %178 = vmatpush1.msra.mxu0 0.0
    %179 = vmatprep.subr.mxu0 0.0
    %180 = vmatpush1.msra.mxu0 0.0
    %v181 = vand.u32 %v65, 4294901760
    %v182 = vsub.f32 %v65, %v181
    %v183 = vand.u32 %v182, 4294901760
    %v184 = vsub.f32 %v182, %v183
    %v185 = vand.u32 %v184, 4294901760
    %186 = vmatprep.subr.mxu0 %v185
    %v187 = vand.u32 %v62, 4294901760
    %v188 = vsub.f32 %v62, %v187
    %v189 = vand.u32 %v188, 4294901760
    %v190 = vsub.f32 %v188, %v189
    %v191 = vand.u32 %v190, 4294901760
    %192 = vmatpush1.msra.mxu0 %v191
    %v193 = vand.u32 %v43, 4294901760
    %v194 = vsub.f32 %v43, %v193
    %v195 = vand.u32 %v194, 4294901760
    %v196 = vsub.f32 %v194, %v195
    %v197 = vand.u32 %v196, 4294901760
    %198 = vmatprep.subr.mxu0 %v197
    %v199 = vand.u32 %v42, 4294901760
    %v200 = vsub.f32 %v42, %v199
    %v201 = vand.u32 %v200, 4294901760
    %v202 = vsub.f32 %v200, %v201
    %v203 = vand.u32 %v202, 4294901760
    %204 = vmatpush1.msra.mxu0 %v203
    %v205 = vand.u32 %v39, 4294901760
    %v206 = vsub.f32 %v39, %v205
    %v207 = vand.u32 %v206, 4294901760
    %v208 = vsub.f32 %v206, %v207
    %v209 = vand.u32 %v208, 4294901760
    %210 = vmatprep.subr.mxu0 %v209
    %v211 = vand.u32 %v38, 4294901760
    %v212 = vsub.f32 %v38, %v211
    %v213 = vand.u32 %v212, 4294901760
    %v214 = vsub.f32 %v212, %v213
    %v215 = vand.u32 %v214, 4294901760
    %216 = vmatpush1.msra.mxu0 %v215
    %v217 = vand.u32 %v35, 4294901760
    %v218 = vsub.f32 %v35, %v217
    %v219 = vand.u32 %v218, 4294901760
    %v220 = vsub.f32 %v218, %v219
    %v221 = vand.u32 %v220, 4294901760
    %222 = vmatprep.subr.mxu0 %v221
    %v223 = vand.u32 %v34, 4294901760
    %v224 = vsub.f32 %v34, %v223
    %v225 = vand.u32 %v224, 4294901760
    %v226 = vsub.f32 %v224, %v225
    %v227 = vand.u32 %v226, 4294901760
    %228 = vmatpush1.msra.mxu0 %v227
    %v229 = vand.u32 %v31, 4294901760
    %v230 = vsub.f32 %v31, %v229
    %v231 = vand.u32 %v230, 4294901760
    %v232 = vsub.f32 %v230, %v231
    %v233 = vand.u32 %v232, 4294901760
    %234 = vmatprep.subr.mxu0 %v233
    %v235 = vand.u32 %v30, 4294901760
    %v236 = vsub.f32 %v30, %v235
    %v237 = vand.u32 %v236, 4294901760
    %v238 = vsub.f32 %v236, %v237
    %v239 = vand.u32 %v238, 4294901760
    %240 = vmatpush1.msra.mxu0 %v239
    %241 = vmatprep.subr.mxu0 0.0
    %242 = vmatpush2.msra.mxu0 0.0
    %243 = vmatprep.subr.mxu0 0.0
    %244 = vmatpush2.msra.mxu0 0.0
    %245 = vmatprep.subr.mxu0 0.0
    %246 = vmatpush2.msra.mxu0 0.0
    %247 = vmatprep.subr.mxu0 0.0
    %248 = vmatpush2.msra.mxu0 0.0
    %249 = vmatprep.subr.mxu0 0.0
    %250 = vmatpush2.msra.mxu0 0.0
    %251 = vmatprep.subr.mxu0 0.0
    %252 = vmatpush2.msra.mxu0 0.0
    %253 = vmatprep.subr.mxu0 0.0
    %254 = vmatpush2.msra.mxu0 0.0
    %255 = vmatprep.subr.mxu0 0.0
    %256 = vmatpush2.msra.mxu0 0.0
    %257 = vmatprep.subr.mxu0 0.0
    %258 = vmatpush2.msra.mxu0 0.0
    %259 = vmatprep.subr.mxu0 0.0
    %260 = vmatpush2.msra.mxu0 0.0
    %261 = vmatprep.subr.mxu0 0.0
    %262 = vmatpush2.msra.mxu0 0.0
    %263 = vmatprep.subr.mxu0 0.0
    %264 = vmatpush2.msra.mxu0 0.0
    %265 = vmatprep.subr.mxu0 0.0
    %266 = vmatpush2.msra.mxu0 0.0
    %267 = vmatprep.subr.mxu0 0.0
    %268 = vmatpush2.msra.mxu0 0.0
    %269 = vmatprep.subr.mxu0 0.0
    %270 = vmatpush2.msra.mxu0 0.0
    %271 = vmatprep.subr.mxu0 0.0
    %272 = vmatpush2.msra.mxu0 0.0
    %273 = vmatprep.mubr.f32.mxu0 0.0
    %v274 = vand.u32 %v58, 4294901760
    %275 = vmatmul.mubr.f32.gmra.mxu0 %v274
    %v276 = vpop.f32.mrf.mxu0
    %v277 = vadd.f32 %v155, %v276
    %v278 = vpop.f32.mrf.mxu0
    %v279 = vadd.f32 %v157, %v278
    %280 = vdwg.mxu0
    %281 = vmatprep.subr.mxu0 0.0
    %282 = vmatpush1.msra.mxu0 0.0
    %283 = vmatprep.subr.mxu0 0.0
    %284 = vmatpush1.msra.mxu0 0.0
    %285 = vmatprep.subr.mxu0 0.0
    %286 = vmatpush1.msra.mxu0 0.0
    %287 = vmatprep.subr.mxu0 0.0
    %288 = vmatpush1.msra.mxu0 0.0
    %289 = vmatprep.subr.mxu0 0.0
    %290 = vmatpush1.msra.mxu0 0.0
    %291 = vmatprep.subr.mxu0 0.0
    %292 = vmatpush1.msra.mxu0 0.0
    %293 = vmatprep.subr.mxu0 0.0
    %294 = vmatpush1.msra.mxu0 0.0
    %295 = vmatprep.subr.mxu0 0.0
    %296 = vmatpush1.msra.mxu0 0.0
    %297 = vmatprep.subr.mxu0 0.0
    %298 = vmatpush1.msra.mxu0 0.0
    %299 = vmatprep.subr.mxu0 0.0
    %300 = vmatpush1.msra.mxu0 0.0
    %301 = vmatprep.subr.mxu0 0.0
    %302 = vmatpush1.msra.mxu0 0.0
    %v303 = vand.u32 %v65, 4294901760
    %v304 = vsub.f32 %v65, %v303
    %305 = vmatprep.subr.mxu0 %v304
    %v306 = vand.u32 %v62, 4294901760
    %v307 = vsub.f32 %v62, %v306
    %308 = vmatpush1.msra.mxu0 %v307
    %v309 = vand.u32 %v43, 4294901760
    %v310 = vsub.f32 %v43, %v309
    %311 = vmatprep.subr.mxu0 %v310
    %v312 = vand.u32 %v42, 4294901760
    %v313 = vsub.f32 %v42, %v312
    %314 = vmatpush1.msra.mxu0 %v313
    %v315 = vand.u32 %v39, 4294901760
    %v316 = vsub.f32 %v39, %v315
    %317 = vmatprep.subr.mxu0 %v316
    %v318 = vand.u32 %v38, 4294901760
    %v319 = vsub.f32 %v38, %v318
    %320 = vmatpush1.msra.mxu0 %v319
    %v321 = vand.u32 %v35, 4294901760
    %v322 = vsub.f32 %v35, %v321
    %323 = vmatprep.subr.mxu0 %v322
    %v324 = vand.u32 %v34, 4294901760
    %v325 = vsub.f32 %v34, %v324
    %326 = vmatpush1.msra.mxu0 %v325
    %v327 = vand.u32 %v31, 4294901760
    %v328 = vsub.f32 %v31, %v327
    %329 = vmatprep.subr.mxu0 %v328
    %v330 = vand.u32 %v30, 4294901760
    %v331 = vsub.f32 %v30, %v330
    %332 = vmatpush1.msra.mxu0 %v331
    %333 = vmatprep.subr.mxu0 0.0
    %334 = vmatpush2.msra.mxu0 0.0
    %335 = vmatprep.subr.mxu0 0.0
    %336 = vmatpush2.msra.mxu0 0.0
    %337 = vmatprep.subr.mxu0 0.0
    %338 = vmatpush2.msra.mxu0 0.0
    %339 = vmatprep.subr.mxu0 0.0
    %340 = vmatpush2.msra.mxu0 0.0
    %341 = vmatprep.subr.mxu0 0.0
    %342 = vmatpush2.msra.mxu0 0.0
    %343 = vmatprep.subr.mxu0 0.0
    %344 = vmatpush2.msra.mxu0 0.0
    %345 = vmatprep.subr.mxu0 0.0
    %346 = vmatpush2.msra.mxu0 0.0
    %347 = vmatprep.subr.mxu0 0.0
    %348 = vmatpush2.msra.mxu0 0.0
    %349 = vmatprep.subr.mxu0 0.0
    %350 = vmatpush2.msra.mxu0 0.0
    %351 = vmatprep.subr.mxu0 0.0
    %352 = vmatpush2.msra.mxu0 0.0
    %353 = vmatprep.subr.mxu0 0.0
    %354 = vmatpush2.msra.mxu0 0.0
    %355 = vmatprep.subr.mxu0 0.0
    %356 = vmatpush2.msra.mxu0 0.0
    %357 = vmatprep.subr.mxu0 0.0
    %358 = vmatpush2.msra.mxu0 0.0
    %359 = vmatprep.subr.mxu0 0.0
    %360 = vmatpush2.msra.mxu0 0.0
    %361 = vmatprep.subr.mxu0 0.0
    %362 = vmatpush2.msra.mxu0 0.0
    %363 = vmatprep.subr.mxu0 0.0
    %364 = vmatpush2.msra.mxu0 0.0
    %365 = vmatprep.mubr.f32.mxu0 0.0
    %v366 = vand.u32 %v58, 4294901760
    %v367 = vsub.f32 %v58, %v366
    %368 = vmatmul.mubr.f32.gmra.mxu0 %v367
    %v369 = vpop.f32.mrf.mxu0
    %v370 = vadd.f32 %v277, %v369
    %v371 = vpop.f32.mrf.mxu0
    %v372 = vadd.f32 %v279, %v371
    %373 = vdwg.mxu0
    %374 = vmatprep.subr.mxu0 0.0
    %375 = vmatpush1.msra.mxu0 0.0
    %376 = vmatprep.subr.mxu0 0.0
    %377 = vmatpush1.msra.mxu0 0.0
    %378 = vmatprep.subr.mxu0 0.0
    %379 = vmatpush1.msra.mxu0 0.0
    %380 = vmatprep.subr.mxu0 0.0
    %381 = vmatpush1.msra.mxu0 0.0
    %382 = vmatprep.subr.mxu0 0.0
    %383 = vmatpush1.msra.mxu0 0.0
    %384 = vmatprep.subr.mxu0 0.0
    %385 = vmatpush1.msra.mxu0 0.0
    %386 = vmatprep.subr.mxu0 0.0
    %387 = vmatpush1.msra.mxu0 0.0
    %388 = vmatprep.subr.mxu0 0.0
    %389 = vmatpush1.msra.mxu0 0.0
    %390 = vmatprep.subr.mxu0 0.0
    %391 = vmatpush1.msra.mxu0 0.0
    %392 = vmatprep.subr.mxu0 0.0
    %393 = vmatpush1.msra.mxu0 0.0
    %394 = vmatprep.subr.mxu0 0.0
    %395 = vmatpush1.msra.mxu0 0.0
    %v396 = vand.u32 %v65, 4294901760
    %397 = vmatprep.subr.mxu0 %v396
    %v398 = vand.u32 %v62, 4294901760
    %399 = vmatpush1.msra.mxu0 %v398
    %v400 = vand.u32 %v43, 4294901760
    %401 = vmatprep.subr.mxu0 %v400
    %v402 = vand.u32 %v42, 4294901760
    %403 = vmatpush1.msra.mxu0 %v402
    %v404 = vand.u32 %v39, 4294901760
    %405 = vmatprep.subr.mxu0 %v404
    %v406 = vand.u32 %v38, 4294901760
    %407 = vmatpush1.msra.mxu0 %v406
    %v408 = vand.u32 %v35, 4294901760
    %409 = vmatprep.subr.mxu0 %v408
    %v410 = vand.u32 %v34, 4294901760
    %411 = vmatpush1.msra.mxu0 %v410
    %v412 = vand.u32 %v31, 4294901760
    %413 = vmatprep.subr.mxu0 %v412
    %v414 = vand.u32 %v30, 4294901760
    %415 = vmatpush1.msra.mxu0 %v414
    %416 = vmatprep.subr.mxu0 0.0
    %417 = vmatpush2.msra.mxu0 0.0
    %418 = vmatprep.subr.mxu0 0.0
    %419 = vmatpush2.msra.mxu0 0.0
    %420 = vmatprep.subr.mxu0 0.0
    %421 = vmatpush2.msra.mxu0 0.0
    %422 = vmatprep.subr.mxu0 0.0
    %423 = vmatpush2.msra.mxu0 0.0
    %424 = vmatprep.subr.mxu0 0.0
    %425 = vmatpush2.msra.mxu0 0.0
    %426 = vmatprep.subr.mxu0 0.0
    %427 = vmatpush2.msra.mxu0 0.0
    %428 = vmatprep.subr.mxu0 0.0
    %429 = vmatpush2.msra.mxu0 0.0
    %430 = vmatprep.subr.mxu0 0.0
    %431 = vmatpush2.msra.mxu0 0.0
    %432 = vmatprep.subr.mxu0 0.0
    %433 = vmatpush2.msra.mxu0 0.0
    %434 = vmatprep.subr.mxu0 0.0
    %435 = vmatpush2.msra.mxu0 0.0
    %436 = vmatprep.subr.mxu0 0.0
    %437 = vmatpush2.msra.mxu0 0.0
    %438 = vmatprep.subr.mxu0 0.0
    %439 = vmatpush2.msra.mxu0 0.0
    %440 = vmatprep.subr.mxu0 0.0
    %441 = vmatpush2.msra.mxu0 0.0
    %442 = vmatprep.subr.mxu0 0.0
    %443 = vmatpush2.msra.mxu0 0.0
    %444 = vmatprep.subr.mxu0 0.0
    %445 = vmatpush2.msra.mxu0 0.0
    %446 = vmatprep.subr.mxu0 0.0
    %447 = vmatpush2.msra.mxu0 0.0
    %448 = vmatprep.mubr.f32.mxu0 0.0
    %v449 = vand.u32 %v58, 4294901760
    %v450 = vsub.f32 %v58, %v449
    %v451 = vand.u32 %v450, 4294901760
    %452 = vmatmul.mubr.f32.gmra.mxu0 %v451
    %v453 = vpop.f32.mrf.mxu0
    %v454 = vadd.f32 %v370, %v453
    %v455 = vpop.f32.mrf.mxu0
    %v456 = vadd.f32 %v372, %v455
    %457 = vdwg.mxu0
    %458 = vmatprep.subr.mxu0 0.0
    %459 = vmatpush1.msra.mxu0 0.0
    %460 = vmatprep.subr.mxu0 0.0
    %461 = vmatpush1.msra.mxu0 0.0
    %462 = vmatprep.subr.mxu0 0.0
    %463 = vmatpush1.msra.mxu0 0.0
    %464 = vmatprep.subr.mxu0 0.0
    %465 = vmatpush1.msra.mxu0 0.0
    %466 = vmatprep.subr.mxu0 0.0
    %467 = vmatpush1.msra.mxu0 0.0
    %468 = vmatprep.subr.mxu0 0.0
    %469 = vmatpush1.msra.mxu0 0.0
    %470 = vmatprep.subr.mxu0 0.0
    %471 = vmatpush1.msra.mxu0 0.0
    %472 = vmatprep.subr.mxu0 0.0
    %473 = vmatpush1.msra.mxu0 0.0
    %474 = vmatprep.subr.mxu0 0.0
    %475 = vmatpush1.msra.mxu0 0.0
    %476 = vmatprep.subr.mxu0 0.0
    %477 = vmatpush1.msra.mxu0 0.0
    %478 = vmatprep.subr.mxu0 0.0
    %479 = vmatpush1.msra.mxu0 0.0
    %v480 = vand.u32 %v65, 4294901760
    %v481 = vsub.f32 %v65, %v480
    %v482 = vand.u32 %v481, 4294901760
    %483 = vmatprep.subr.mxu0 %v482
    %v484 = vand.u32 %v62, 4294901760
    %v485 = vsub.f32 %v62, %v484
    %v486 = vand.u32 %v485, 4294901760
    %487 = vmatpush1.msra.mxu0 %v486
    %v488 = vand.u32 %v43, 4294901760
    %v489 = vsub.f32 %v43, %v488
    %v490 = vand.u32 %v489, 4294901760
    %491 = vmatprep.subr.mxu0 %v490
    %v492 = vand.u32 %v42, 4294901760
    %v493 = vsub.f32 %v42, %v492
    %v494 = vand.u32 %v493, 4294901760
    %495 = vmatpush1.msra.mxu0 %v494
    %v496 = vand.u32 %v39, 4294901760
    %v497 = vsub.f32 %v39, %v496
    %v498 = vand.u32 %v497, 4294901760
    %499 = vmatprep.subr.mxu0 %v498
    %v500 = vand.u32 %v38, 4294901760
    %v501 = vsub.f32 %v38, %v500
    %v502 = vand.u32 %v501, 4294901760
    %503 = vmatpush1.msra.mxu0 %v502
    %v504 = vand.u32 %v35, 4294901760
    %v505 = vsub.f32 %v35, %v504
    %v506 = vand.u32 %v505, 4294901760
    %507 = vmatprep.subr.mxu0 %v506
    %v508 = vand.u32 %v34, 4294901760
    %v509 = vsub.f32 %v34, %v508
    %v510 = vand.u32 %v509, 4294901760
    %511 = vmatpush1.msra.mxu0 %v510
    %v512 = vand.u32 %v31, 4294901760
    %v513 = vsub.f32 %v31, %v512
    %v514 = vand.u32 %v513, 4294901760
    %515 = vmatprep.subr.mxu0 %v514
    %v516 = vand.u32 %v30, 4294901760
    %v517 = vsub.f32 %v30, %v516
    %v518 = vand.u32 %v517, 4294901760
    %519 = vmatpush1.msra.mxu0 %v518
    %520 = vmatprep.subr.mxu0 0.0
    %521 = vmatpush2.msra.mxu0 0.0
    %522 = vmatprep.subr.mxu0 0.0
    %523 = vmatpush2.msra.mxu0 0.0
    %524 = vmatprep.subr.mxu0 0.0
    %525 = vmatpush2.msra.mxu0 0.0
    %526 = vmatprep.subr.mxu0 0.0
    %527 = vmatpush2.msra.mxu0 0.0
    %528 = vmatprep.subr.mxu0 0.0
    %529 = vmatpush2.msra.mxu0 0.0
    %530 = vmatprep.subr.mxu0 0.0
    %531 = vmatpush2.msra.mxu0 0.0
    %532 = vmatprep.subr.mxu0 0.0
    %533 = vmatpush2.msra.mxu0 0.0
    %534 = vmatprep.subr.mxu0 0.0
    %535 = vmatpush2.msra.mxu0 0.0
    %536 = vmatprep.subr.mxu0 0.0
    %537 = vmatpush2.msra.mxu0 0.0
    %538 = vmatprep.subr.mxu0 0.0
    %539 = vmatpush2.msra.mxu0 0.0
    %540 = vmatprep.subr.mxu0 0.0
    %541 = vmatpush2.msra.mxu0 0.0
    %542 = vmatprep.subr.mxu0 0.0
    %543 = vmatpush2.msra.mxu0 0.0
    %544 = vmatprep.subr.mxu0 0.0
    %545 = vmatpush2.msra.mxu0 0.0
    %546 = vmatprep.subr.mxu0 0.0
    %547 = vmatpush2.msra.mxu0 0.0
    %548 = vmatprep.subr.mxu0 0.0
    %549 = vmatpush2.msra.mxu0 0.0
    %550 = vmatprep.subr.mxu0 0.0
    %551 = vmatpush2.msra.mxu0 0.0
    %552 = vmatprep.mubr.f32.mxu0 0.0
    %v553 = vand.u32 %v58, 4294901760
    %554 = vmatmul.mubr.f32.gmra.mxu0 %v553
    %v555 = vpop.f32.mrf.mxu0
    %v556 = vadd.f32 %v454, %v555
    %v557 = vpop.f32.mrf.mxu0
    %v558 = vadd.f32 %v456, %v557
    %559 = vdwg.mxu0
    %560 = vmatprep.subr.mxu0 0.0
    %561 = vmatpush1.msra.mxu0 0.0
    %562 = vmatprep.subr.mxu0 0.0
    %563 = vmatpush1.msra.mxu0 0.0
    %564 = vmatprep.subr.mxu0 0.0
    %565 = vmatpush1.msra.mxu0 0.0
    %566 = vmatprep.subr.mxu0 0.0
    %567 = vmatpush1.msra.mxu0 0.0
    %568 = vmatprep.subr.mxu0 0.0
    %569 = vmatpush1.msra.mxu0 0.0
    %570 = vmatprep.subr.mxu0 0.0
    %571 = vmatpush1.msra.mxu0 0.0
    %572 = vmatprep.subr.mxu0 0.0
    %573 = vmatpush1.msra.mxu0 0.0
    %574 = vmatprep.subr.mxu0 0.0
    %575 = vmatpush1.msra.mxu0 0.0
    %576 = vmatprep.subr.mxu0 0.0
    %577 = vmatpush1.msra.mxu0 0.0
    %578 = vmatprep.subr.mxu0 0.0
    %579 = vmatpush1.msra.mxu0 0.0
    %580 = vmatprep.subr.mxu0 0.0
    %581 = vmatpush1.msra.mxu0 0.0
    %v582 = vand.u32 %v65, 4294901760
    %583 = vmatprep.subr.mxu0 %v582
    %v584 = vand.u32 %v62, 4294901760
    %585 = vmatpush1.msra.mxu0 %v584
    %v586 = vand.u32 %v43, 4294901760
    %587 = vmatprep.subr.mxu0 %v586
    %v588 = vand.u32 %v42, 4294901760
    %589 = vmatpush1.msra.mxu0 %v588
    %v590 = vand.u32 %v39, 4294901760
    %591 = vmatprep.subr.mxu0 %v590
    %v592 = vand.u32 %v38, 4294901760
    %593 = vmatpush1.msra.mxu0 %v592
    %v594 = vand.u32 %v35, 4294901760
    %595 = vmatprep.subr.mxu0 %v594
    %v596 = vand.u32 %v34, 4294901760
    %597 = vmatpush1.msra.mxu0 %v596
    %v598 = vand.u32 %v31, 4294901760
    %599 = vmatprep.subr.mxu0 %v598
    %v600 = vand.u32 %v30, 4294901760
    %601 = vmatpush1.msra.mxu0 %v600
    %602 = vmatprep.subr.mxu0 0.0
    %603 = vmatpush2.msra.mxu0 0.0
    %604 = vmatprep.subr.mxu0 0.0
    %605 = vmatpush2.msra.mxu0 0.0
    %606 = vmatprep.subr.mxu0 0.0
    %607 = vmatpush2.msra.mxu0 0.0
    %608 = vmatprep.subr.mxu0 0.0
    %609 = vmatpush2.msra.mxu0 0.0
    %610 = vmatprep.subr.mxu0 0.0
    %611 = vmatpush2.msra.mxu0 0.0
    %612 = vmatprep.subr.mxu0 0.0
    %613 = vmatpush2.msra.mxu0 0.0
    %614 = vmatprep.subr.mxu0 0.0
    %615 = vmatpush2.msra.mxu0 0.0
    %616 = vmatprep.subr.mxu0 0.0
    %617 = vmatpush2.msra.mxu0 0.0
    %618 = vmatprep.subr.mxu0 0.0
    %619 = vmatpush2.msra.mxu0 0.0
    %620 = vmatprep.subr.mxu0 0.0
    %621 = vmatpush2.msra.mxu0 0.0
    %622 = vmatprep.subr.mxu0 0.0
    %623 = vmatpush2.msra.mxu0 0.0
    %624 = vmatprep.subr.mxu0 0.0
    %625 = vmatpush2.msra.mxu0 0.0
    %626 = vmatprep.subr.mxu0 0.0
    %627 = vmatpush2.msra.mxu0 0.0
    %628 = vmatprep.subr.mxu0 0.0
    %629 = vmatpush2.msra.mxu0 0.0
    %630 = vmatprep.subr.mxu0 0.0
    %631 = vmatpush2.msra.mxu0 0.0
    %632 = vmatprep.subr.mxu0 0.0
    %633 = vmatpush2.msra.mxu0 0.0
    %634 = vmatprep.mubr.f32.mxu0 0.0
    %v635 = vand.u32 %v58, 4294901760
    %636 = vmatmul.mubr.f32.gmra.mxu0 %v635
    %v637 = vpop.f32.mrf.mxu0
    %v638 = vadd.f32 %v556, %v637
    %v639 = vpop.f32.mrf.mxu0
    %v640 = vadd.f32 %v558, %v639
    %641 = vdwg.mxu0
    %642 = vmatprep.subr.mxu0 0.0
    %643 = vmatpush1.msra.mxu0 0.0
    %644 = vmatprep.subr.mxu0 0.0
    %645 = vmatpush1.msra.mxu0 0.0
    %646 = vmatprep.subr.mxu0 0.0
    %647 = vmatpush1.msra.mxu0 0.0
    %648 = vmatprep.subr.mxu0 0.0
    %649 = vmatpush1.msra.mxu0 0.0
    %650 = vmatprep.subr.mxu0 0.0
    %651 = vmatpush1.msra.mxu0 0.0
    %652 = vmatprep.subr.mxu0 0.0
    %653 = vmatpush1.msra.mxu0 0.0
    %654 = vmatprep.subr.mxu0 0.0
    %655 = vmatpush1.msra.mxu0 0.0
    %656 = vmatprep.subr.mxu0 0.0
    %657 = vmatpush1.msra.mxu0 0.0
    %658 = vmatprep.subr.mxu0 0.0
    %659 = vmatpush1.msra.mxu0 0.0
    %660 = vmatprep.subr.mxu0 0.0
    %661 = vmatpush1.msra.mxu0 0.0
    %662 = vmatprep.subr.mxu0 0.0
    %663 = vmatpush1.msra.mxu0 0.0
    %v664 = vand.u32 %v71, 4294901760
    %665 = vmatprep.subr.mxu0 %v664
    %v666 = vand.u32 %v68, 4294901760
    %667 = vmatpush1.msra.mxu0 %v666
    %v668 = vand.u32 %v45, 4294901760
    %669 = vmatprep.subr.mxu0 %v668
    %v670 = vand.u32 %v44, 4294901760
    %671 = vmatpush1.msra.mxu0 %v670
    %v672 = vand.u32 %v41, 4294901760
    %673 = vmatprep.subr.mxu0 %v672
    %v674 = vand.u32 %v40, 4294901760
    %675 = vmatpush1.msra.mxu0 %v674
    %v676 = vand.u32 %v37, 4294901760
    %677 = vmatprep.subr.mxu0 %v676
    %v678 = vand.u32 %v36, 4294901760
    %679 = vmatpush1.msra.mxu0 %v678
    %v680 = vand.u32 %v33, 4294901760
    %681 = vmatprep.subr.mxu0 %v680
    %v682 = vand.u32 %v32, 4294901760
    %683 = vmatpush1.msra.mxu0 %v682
    %684 = vmatprep.subr.mxu0 0.0
    %685 = vmatpush2.msra.mxu0 0.0
    %686 = vmatprep.subr.mxu0 0.0
    %687 = vmatpush2.msra.mxu0 0.0
    %688 = vmatprep.subr.mxu0 0.0
    %689 = vmatpush2.msra.mxu0 0.0
    %690 = vmatprep.subr.mxu0 0.0
    %691 = vmatpush2.msra.mxu0 0.0
    %692 = vmatprep.subr.mxu0 0.0
    %693 = vmatpush2.msra.mxu0 0.0
    %694 = vmatprep.subr.mxu0 0.0
    %695 = vmatpush2.msra.mxu0 0.0
    %696 = vmatprep.subr.mxu0 0.0
    %697 = vmatpush2.msra.mxu0 0.0
    %698 = vmatprep.subr.mxu0 0.0
    %699 = vmatpush2.msra.mxu0 0.0
    %700 = vmatprep.subr.mxu0 0.0
    %701 = vmatpush2.msra.mxu0 0.0
    %702 = vmatprep.subr.mxu0 0.0
    %703 = vmatpush2.msra.mxu0 0.0
    %704 = vmatprep.subr.mxu0 0.0
    %705 = vmatpush2.msra.mxu0 0.0
    %706 = vmatprep.subr.mxu0 0.0
    %707 = vmatpush2.msra.mxu0 0.0
    %708 = vmatprep.subr.mxu0 0.0
    %709 = vmatpush2.msra.mxu0 0.0
    %710 = vmatprep.subr.mxu0 0.0
    %711 = vmatpush2.msra.mxu0 0.0
    %712 = vmatprep.subr.mxu0 0.0
    %713 = vmatpush2.msra.mxu0 0.0
    %714 = vmatprep.subr.mxu0 0.0
    %715 = vmatpush2.msra.mxu0 0.0
    %716 = vmatprep.mubr.f32.mxu0 0.0
    %v717 = vand.u32 %v58, 4294901760
    %v718 = vsub.f32 %v58, %v717
    %v719 = vand.u32 %v718, 4294901760
    %v720 = vsub.f32 %v718, %v719
    %v721 = vand.u32 %v720, 4294901760
    %722 = vmatmul.mubr.f32.gmra.mxu0 %v721
    %v723 = vpop.f32.mrf.mxu0
    %v724 = vadd.f32 %v54, %v723
    %v725 = vpop.f32.mrf.mxu0
    %v726 = vadd.f32 %v54, %v725
    %727 = vdwg.mxu0
    %728 = vmatprep.subr.mxu0 0.0
    %729 = vmatpush1.msra.mxu0 0.0
    %730 = vmatprep.subr.mxu0 0.0
    %731 = vmatpush1.msra.mxu0 0.0
    %732 = vmatprep.subr.mxu0 0.0
    %733 = vmatpush1.msra.mxu0 0.0
    %734 = vmatprep.subr.mxu0 0.0
    %735 = vmatpush1.msra.mxu0 0.0
    %736 = vmatprep.subr.mxu0 0.0
    %737 = vmatpush1.msra.mxu0 0.0
    %738 = vmatprep.subr.mxu0 0.0
    %739 = vmatpush1.msra.mxu0 0.0
    %740 = vmatprep.subr.mxu0 0.0
    %741 = vmatpush1.msra.mxu0 0.0
    %742 = vmatprep.subr.mxu0 0.0
    %743 = vmatpush1.msra.mxu0 0.0
    %744 = vmatprep.subr.mxu0 0.0
    %745 = vmatpush1.msra.mxu0 0.0
    %746 = vmatprep.subr.mxu0 0.0
    %747 = vmatpush1.msra.mxu0 0.0
    %748 = vmatprep.subr.mxu0 0.0
    %749 = vmatpush1.msra.mxu0 0.0
    %v750 = vand.u32 %v71, 4294901760
    %v751 = vsub.f32 %v71, %v750
    %v752 = vand.u32 %v751, 4294901760
    %v753 = vsub.f32 %v751, %v752
    %v754 = vand.u32 %v753, 4294901760
    %755 = vmatprep.subr.mxu0 %v754
    %v756 = vand.u32 %v68, 4294901760
    %v757 = vsub.f32 %v68, %v756
    %v758 = vand.u32 %v757, 4294901760
    %v759 = vsub.f32 %v757, %v758
    %v760 = vand.u32 %v759, 4294901760
    %761 = vmatpush1.msra.mxu0 %v760
    %v762 = vand.u32 %v45, 4294901760
    %v763 = vsub.f32 %v45, %v762
    %v764 = vand.u32 %v763, 4294901760
    %v765 = vsub.f32 %v763, %v764
    %v766 = vand.u32 %v765, 4294901760
    %767 = vmatprep.subr.mxu0 %v766
    %v768 = vand.u32 %v44, 4294901760
    %v769 = vsub.f32 %v44, %v768
    %v770 = vand.u32 %v769, 4294901760
    %v771 = vsub.f32 %v769, %v770
    %v772 = vand.u32 %v771, 4294901760
    %773 = vmatpush1.msra.mxu0 %v772
    %v774 = vand.u32 %v41, 4294901760
    %v775 = vsub.f32 %v41, %v774
    %v776 = vand.u32 %v775, 4294901760
    %v777 = vsub.f32 %v775, %v776
    %v778 = vand.u32 %v777, 4294901760
    %779 = vmatprep.subr.mxu0 %v778
    %v780 = vand.u32 %v40, 4294901760
    %v781 = vsub.f32 %v40, %v780
    %v782 = vand.u32 %v781, 4294901760
    %v783 = vsub.f32 %v781, %v782
    %v784 = vand.u32 %v783, 4294901760
    %785 = vmatpush1.msra.mxu0 %v784
    %v786 = vand.u32 %v37, 4294901760
    %v787 = vsub.f32 %v37, %v786
    %v788 = vand.u32 %v787, 4294901760
    %v789 = vsub.f32 %v787, %v788
    %v790 = vand.u32 %v789, 4294901760
    %791 = vmatprep.subr.mxu0 %v790
    %v792 = vand.u32 %v36, 4294901760
    %v793 = vsub.f32 %v36, %v792
    %v794 = vand.u32 %v793, 4294901760
    %v795 = vsub.f32 %v793, %v794
    %v796 = vand.u32 %v795, 4294901760
    %797 = vmatpush1.msra.mxu0 %v796
    %v798 = vand.u32 %v33, 4294901760
    %v799 = vsub.f32 %v33, %v798
    %v800 = vand.u32 %v799, 4294901760
    %v801 = vsub.f32 %v799, %v800
    %v802 = vand.u32 %v801, 4294901760
    %803 = vmatprep.subr.mxu0 %v802
    %v804 = vand.u32 %v32, 4294901760
    %v805 = vsub.f32 %v32, %v804
    %v806 = vand.u32 %v805, 4294901760
    %v807 = vsub.f32 %v805, %v806
    %v808 = vand.u32 %v807, 4294901760
    %809 = vmatpush1.msra.mxu0 %v808
    %810 = vmatprep.subr.mxu0 0.0
    %811 = vmatpush2.msra.mxu0 0.0
    %812 = vmatprep.subr.mxu0 0.0
    %813 = vmatpush2.msra.mxu0 0.0
    %814 = vmatprep.subr.mxu0 0.0
    %815 = vmatpush2.msra.mxu0 0.0
    %816 = vmatprep.subr.mxu0 0.0
    %817 = vmatpush2.msra.mxu0 0.0
    %818 = vmatprep.subr.mxu0 0.0
    %819 = vmatpush2.msra.mxu0 0.0
    %820 = vmatprep.subr.mxu0 0.0
    %821 = vmatpush2.msra.mxu0 0.0
    %822 = vmatprep.subr.mxu0 0.0
    %823 = vmatpush2.msra.mxu0 0.0
    %824 = vmatprep.subr.mxu0 0.0
    %825 = vmatpush2.msra.mxu0 0.0
    %826 = vmatprep.subr.mxu0 0.0
    %827 = vmatpush2.msra.mxu0 0.0
    %828 = vmatprep.subr.mxu0 0.0
    %829 = vmatpush2.msra.mxu0 0.0
    %830 = vmatprep.subr.mxu0 0.0
    %831 = vmatpush2.msra.mxu0 0.0
    %832 = vmatprep.subr.mxu0 0.0
    %833 = vmatpush2.msra.mxu0 0.0
    %834 = vmatprep.subr.mxu0 0.0
    %835 = vmatpush2.msra.mxu0 0.0
    %836 = vmatprep.subr.mxu0 0.0
    %837 = vmatpush2.msra.mxu0 0.0
    %838 = vmatprep.subr.mxu0 0.0
    %839 = vmatpush2.msra.mxu0 0.0
    %840 = vmatprep.subr.mxu0 0.0
    %841 = vmatpush2.msra.mxu0 0.0
    %842 = vmatprep.mubr.f32.mxu0 0.0
    %v843 = vand.u32 %v58, 4294901760
    %844 = vmatmul.mubr.f32.gmra.mxu0 %v843
    %v845 = vpop.f32.mrf.mxu0
    %v846 = vadd.f32 %v724, %v845
    %v847 = vpop.f32.mrf.mxu0
    %v848 = vadd.f32 %v726, %v847
    %849 = vdwg.mxu0
    %850 = vmatprep.subr.mxu0 0.0
    %851 = vmatpush1.msra.mxu0 0.0
    %852 = vmatprep.subr.mxu0 0.0
    %853 = vmatpush1.msra.mxu0 0.0
    %854 = vmatprep.subr.mxu0 0.0
    %855 = vmatpush1.msra.mxu0 0.0
    %856 = vmatprep.subr.mxu0 0.0
    %857 = vmatpush1.msra.mxu0 0.0
    %858 = vmatprep.subr.mxu0 0.0
    %859 = vmatpush1.msra.mxu0 0.0
    %860 = vmatprep.subr.mxu0 0.0
    %861 = vmatpush1.msra.mxu0 0.0
    %862 = vmatprep.subr.mxu0 0.0
    %863 = vmatpush1.msra.mxu0 0.0
    %864 = vmatprep.subr.mxu0 0.0
    %865 = vmatpush1.msra.mxu0 0.0
    %866 = vmatprep.subr.mxu0 0.0
    %867 = vmatpush1.msra.mxu0 0.0
    %868 = vmatprep.subr.mxu0 0.0
    %869 = vmatpush1.msra.mxu0 0.0
    %870 = vmatprep.subr.mxu0 0.0
    %871 = vmatpush1.msra.mxu0 0.0
    %v872 = vand.u32 %v71, 4294901760
    %v873 = vsub.f32 %v71, %v872
    %874 = vmatprep.subr.mxu0 %v873
    %v875 = vand.u32 %v68, 4294901760
    %v876 = vsub.f32 %v68, %v875
    %877 = vmatpush1.msra.mxu0 %v876
    %v878 = vand.u32 %v45, 4294901760
    %v879 = vsub.f32 %v45, %v878
    %880 = vmatprep.subr.mxu0 %v879
    %v881 = vand.u32 %v44, 4294901760
    %v882 = vsub.f32 %v44, %v881
    %883 = vmatpush1.msra.mxu0 %v882
    %v884 = vand.u32 %v41, 4294901760
    %v885 = vsub.f32 %v41, %v884
    %886 = vmatprep.subr.mxu0 %v885
    %v887 = vand.u32 %v40, 4294901760
    %v888 = vsub.f32 %v40, %v887
    %889 = vmatpush1.msra.mxu0 %v888
    %v890 = vand.u32 %v37, 4294901760
    %v891 = vsub.f32 %v37, %v890
    %892 = vmatprep.subr.mxu0 %v891
    %v893 = vand.u32 %v36, 4294901760
    %v894 = vsub.f32 %v36, %v893
    %895 = vmatpush1.msra.mxu0 %v894
    %v896 = vand.u32 %v33, 4294901760
    %v897 = vsub.f32 %v33, %v896
    %898 = vmatprep.subr.mxu0 %v897
    %v899 = vand.u32 %v32, 4294901760
    %v900 = vsub.f32 %v32, %v899
    %901 = vmatpush1.msra.mxu0 %v900
    %902 = vmatprep.subr.mxu0 0.0
    %903 = vmatpush2.msra.mxu0 0.0
    %904 = vmatprep.subr.mxu0 0.0
    %905 = vmatpush2.msra.mxu0 0.0
    %906 = vmatprep.subr.mxu0 0.0
    %907 = vmatpush2.msra.mxu0 0.0
    %908 = vmatprep.subr.mxu0 0.0
    %909 = vmatpush2.msra.mxu0 0.0
    %910 = vmatprep.subr.mxu0 0.0
    %911 = vmatpush2.msra.mxu0 0.0
    %912 = vmatprep.subr.mxu0 0.0
    %913 = vmatpush2.msra.mxu0 0.0
    %914 = vmatprep.subr.mxu0 0.0
    %915 = vmatpush2.msra.mxu0 0.0
    %916 = vmatprep.subr.mxu0 0.0
    %917 = vmatpush2.msra.mxu0 0.0
    %918 = vmatprep.subr.mxu0 0.0
    %919 = vmatpush2.msra.mxu0 0.0
    %920 = vmatprep.subr.mxu0 0.0
    %921 = vmatpush2.msra.mxu0 0.0
    %922 = vmatprep.subr.mxu0 0.0
    %923 = vmatpush2.msra.mxu0 0.0
    %924 = vmatprep.subr.mxu0 0.0
    %925 = vmatpush2.msra.mxu0 0.0
    %926 = vmatprep.subr.mxu0 0.0
    %927 = vmatpush2.msra.mxu0 0.0
    %928 = vmatprep.subr.mxu0 0.0
    %929 = vmatpush2.msra.mxu0 0.0
    %930 = vmatprep.subr.mxu0 0.0
    %931 = vmatpush2.msra.mxu0 0.0
    %932 = vmatprep.subr.mxu0 0.0
    %933 = vmatpush2.msra.mxu0 0.0
    %934 = vmatprep.mubr.f32.mxu0 0.0
    %v935 = vand.u32 %v58, 4294901760
    %v936 = vsub.f32 %v58, %v935
    %937 = vmatmul.mubr.f32.gmra.mxu0 %v936
    %v938 = vpop.f32.mrf.mxu0
    %v939 = vadd.f32 %v846, %v938
    %v940 = vpop.f32.mrf.mxu0
    %v941 = vadd.f32 %v848, %v940
    %942 = vdwg.mxu0
    %943 = vmatprep.subr.mxu0 0.0
    %944 = vmatpush1.msra.mxu0 0.0
    %945 = vmatprep.subr.mxu0 0.0
    %946 = vmatpush1.msra.mxu0 0.0
    %947 = vmatprep.subr.mxu0 0.0
    %948 = vmatpush1.msra.mxu0 0.0
    %949 = vmatprep.subr.mxu0 0.0
    %950 = vmatpush1.msra.mxu0 0.0
    %951 = vmatprep.subr.mxu0 0.0
    %952 = vmatpush1.msra.mxu0 0.0
    %953 = vmatprep.subr.mxu0 0.0
    %954 = vmatpush1.msra.mxu0 0.0
    %955 = vmatprep.subr.mxu0 0.0
    %956 = vmatpush1.msra.mxu0 0.0
    %957 = vmatprep.subr.mxu0 0.0
    %958 = vmatpush1.msra.mxu0 0.0
    %959 = vmatprep.subr.mxu0 0.0
    %960 = vmatpush1.msra.mxu0 0.0
    %961 = vmatprep.subr.mxu0 0.0
    %962 = vmatpush1.msra.mxu0 0.0
    %963 = vmatprep.subr.mxu0 0.0
    %964 = vmatpush1.msra.mxu0 0.0
    %v965 = vand.u32 %v71, 4294901760
    %966 = vmatprep.subr.mxu0 %v965
    %v967 = vand.u32 %v68, 4294901760
    %968 = vmatpush1.msra.mxu0 %v967
    %v969 = vand.u32 %v45, 4294901760
    %970 = vmatprep.subr.mxu0 %v969
    %v971 = vand.u32 %v44, 4294901760
    %972 = vmatpush1.msra.mxu0 %v971
    %v973 = vand.u32 %v41, 4294901760
    %974 = vmatprep.subr.mxu0 %v973
    %v975 = vand.u32 %v40, 4294901760
    %976 = vmatpush1.msra.mxu0 %v975
    %v977 = vand.u32 %v37, 4294901760
    %978 = vmatprep.subr.mxu0 %v977
    %v979 = vand.u32 %v36, 4294901760
    %980 = vmatpush1.msra.mxu0 %v979
    %v981 = vand.u32 %v33, 4294901760
    %982 = vmatprep.subr.mxu0 %v981
    %v983 = vand.u32 %v32, 4294901760
    %984 = vmatpush1.msra.mxu0 %v983
    %985 = vmatprep.subr.mxu0 0.0
    %986 = vmatpush2.msra.mxu0 0.0
    %987 = vmatprep.subr.mxu0 0.0
    %988 = vmatpush2.msra.mxu0 0.0
    %989 = vmatprep.subr.mxu0 0.0
    %990 = vmatpush2.msra.mxu0 0.0
    %991 = vmatprep.subr.mxu0 0.0
    %992 = vmatpush2.msra.mxu0 0.0
    %993 = vmatprep.subr.mxu0 0.0
    %994 = vmatpush2.msra.mxu0 0.0
    %995 = vmatprep.subr.mxu0 0.0
    %996 = vmatpush2.msra.mxu0 0.0
    %997 = vmatprep.subr.mxu0 0.0
    %998 = vmatpush2.msra.mxu0 0.0
    %999 = vmatprep.subr.mxu0 0.0
    %1000 = vmatpush2.msra.mxu0 0.0
    %1001 = vmatprep.subr.mxu0 0.0
    %1002 = vmatpush2.msra.mxu0 0.0
    %1003 = vmatprep.subr.mxu0 0.0
    %1004 = vmatpush2.msra.mxu0 0.0
    %1005 = vmatprep.subr.mxu0 0.0
    %1006 = vmatpush2.msra.mxu0 0.0
    %1007 = vmatprep.subr.mxu0 0.0
    %1008 = vmatpush2.msra.mxu0 0.0
    %1009 = vmatprep.subr.mxu0 0.0
    %1010 = vmatpush2.msra.mxu0 0.0
    %1011 = vmatprep.subr.mxu0 0.0
    %1012 = vmatpush2.msra.mxu0 0.0
    %1013 = vmatprep.subr.mxu0 0.0
    %1014 = vmatpush2.msra.mxu0 0.0
    %1015 = vmatprep.subr.mxu0 0.0
    %1016 = vmatpush2.msra.mxu0 0.0
    %1017 = vmatprep.mubr.f32.mxu0 0.0
    %v1018 = vand.u32 %v58, 4294901760
    %v1019 = vsub.f32 %v58, %v1018
    %v1020 = vand.u32 %v1019, 4294901760
    %1021 = vmatmul.mubr.f32.gmra.mxu0 %v1020
    %v1022 = vpop.f32.mrf.mxu0
    %v1023 = vadd.f32 %v939, %v1022
    %v1024 = vpop.f32.mrf.mxu0
    %v1025 = vadd.f32 %v941, %v1024
    %1026 = vdwg.mxu0
    %1027 = vmatprep.subr.mxu0 0.0
    %1028 = vmatpush1.msra.mxu0 0.0
    %1029 = vmatprep.subr.mxu0 0.0
    %1030 = vmatpush1.msra.mxu0 0.0
    %1031 = vmatprep.subr.mxu0 0.0
    %1032 = vmatpush1.msra.mxu0 0.0
    %1033 = vmatprep.subr.mxu0 0.0
    %1034 = vmatpush1.msra.mxu0 0.0
    %1035 = vmatprep.subr.mxu0 0.0
    %1036 = vmatpush1.msra.mxu0 0.0
    %1037 = vmatprep.subr.mxu0 0.0
    %1038 = vmatpush1.msra.mxu0 0.0
    %1039 = vmatprep.subr.mxu0 0.0
    %1040 = vmatpush1.msra.mxu0 0.0
    %1041 = vmatprep.subr.mxu0 0.0
    %1042 = vmatpush1.msra.mxu0 0.0
    %1043 = vmatprep.subr.mxu0 0.0
    %1044 = vmatpush1.msra.mxu0 0.0
    %1045 = vmatprep.subr.mxu0 0.0
    %1046 = vmatpush1.msra.mxu0 0.0
    %1047 = vmatprep.subr.mxu0 0.0
    %1048 = vmatpush1.msra.mxu0 0.0
    %v1049 = vand.u32 %v71, 4294901760
    %v1050 = vsub.f32 %v71, %v1049
    %v1051 = vand.u32 %v1050, 4294901760
    %1052 = vmatprep.subr.mxu0 %v1051
    %v1053 = vand.u32 %v68, 4294901760
    %v1054 = vsub.f32 %v68, %v1053
    %v1055 = vand.u32 %v1054, 4294901760
    %1056 = vmatpush1.msra.mxu0 %v1055
    %v1057 = vand.u32 %v45, 4294901760
    %v1058 = vsub.f32 %v45, %v1057
    %v1059 = vand.u32 %v1058, 4294901760
    %1060 = vmatprep.subr.mxu0 %v1059
    %v1061 = vand.u32 %v44, 4294901760
    %v1062 = vsub.f32 %v44, %v1061
    %v1063 = vand.u32 %v1062, 4294901760
    %1064 = vmatpush1.msra.mxu0 %v1063
    %v1065 = vand.u32 %v41, 4294901760
    %v1066 = vsub.f32 %v41, %v1065
    %v1067 = vand.u32 %v1066, 4294901760
    %1068 = vmatprep.subr.mxu0 %v1067
    %v1069 = vand.u32 %v40, 4294901760
    %v1070 = vsub.f32 %v40, %v1069
    %v1071 = vand.u32 %v1070, 4294901760
    %1072 = vmatpush1.msra.mxu0 %v1071
    %v1073 = vand.u32 %v37, 4294901760
    %v1074 = vsub.f32 %v37, %v1073
    %v1075 = vand.u32 %v1074, 4294901760
    %1076 = vmatprep.subr.mxu0 %v1075
    %v1077 = vand.u32 %v36, 4294901760
    %v1078 = vsub.f32 %v36, %v1077
    %v1079 = vand.u32 %v1078, 4294901760
    %1080 = vmatpush1.msra.mxu0 %v1079
    %v1081 = vand.u32 %v33, 4294901760
    %v1082 = vsub.f32 %v33, %v1081
    %v1083 = vand.u32 %v1082, 4294901760
    %1084 = vmatprep.subr.mxu0 %v1083
    %v1085 = vand.u32 %v32, 4294901760
    %v1086 = vsub.f32 %v32, %v1085
    %v1087 = vand.u32 %v1086, 4294901760
    %1088 = vmatpush1.msra.mxu0 %v1087
    %1089 = vmatprep.subr.mxu0 0.0
    %1090 = vmatpush2.msra.mxu0 0.0
    %1091 = vmatprep.subr.mxu0 0.0
    %1092 = vmatpush2.msra.mxu0 0.0
    %1093 = vmatprep.subr.mxu0 0.0
    %1094 = vmatpush2.msra.mxu0 0.0
    %1095 = vmatprep.subr.mxu0 0.0
    %1096 = vmatpush2.msra.mxu0 0.0
    %1097 = vmatprep.subr.mxu0 0.0
    %1098 = vmatpush2.msra.mxu0 0.0
    %1099 = vmatprep.subr.mxu0 0.0
    %1100 = vmatpush2.msra.mxu0 0.0
    %1101 = vmatprep.subr.mxu0 0.0
    %1102 = vmatpush2.msra.mxu0 0.0
    %1103 = vmatprep.subr.mxu0 0.0
    %1104 = vmatpush2.msra.mxu0 0.0
    %1105 = vmatprep.subr.mxu0 0.0
    %1106 = vmatpush2.msra.mxu0 0.0
    %1107 = vmatprep.subr.mxu0 0.0
    %1108 = vmatpush2.msra.mxu0 0.0
    %1109 = vmatprep.subr.mxu0 0.0
    %1110 = vmatpush2.msra.mxu0 0.0
    %1111 = vmatprep.subr.mxu0 0.0
    %1112 = vmatpush2.msra.mxu0 0.0
    %1113 = vmatprep.subr.mxu0 0.0
    %1114 = vmatpush2.msra.mxu0 0.0
    %1115 = vmatprep.subr.mxu0 0.0
    %1116 = vmatpush2.msra.mxu0 0.0
    %1117 = vmatprep.subr.mxu0 0.0
    %1118 = vmatpush2.msra.mxu0 0.0
    %1119 = vmatprep.subr.mxu0 0.0
    %1120 = vmatpush2.msra.mxu0 0.0
    %1121 = vmatprep.mubr.f32.mxu0 0.0
    %v1122 = vand.u32 %v58, 4294901760
    %1123 = vmatmul.mubr.f32.gmra.mxu0 %v1122
    %v1124 = vpop.f32.mrf.mxu0
    %v1125 = vadd.f32 %v1023, %v1124
    %v1126 = vpop.f32.mrf.mxu0
    %v1127 = vadd.f32 %v1025, %v1126
    %1128 = vdwg.mxu0
    %1129 = vmatprep.subr.mxu0 0.0
    %1130 = vmatpush1.msra.mxu0 0.0
    %1131 = vmatprep.subr.mxu0 0.0
    %1132 = vmatpush1.msra.mxu0 0.0
    %1133 = vmatprep.subr.mxu0 0.0
    %1134 = vmatpush1.msra.mxu0 0.0
    %1135 = vmatprep.subr.mxu0 0.0
    %1136 = vmatpush1.msra.mxu0 0.0
    %1137 = vmatprep.subr.mxu0 0.0
    %1138 = vmatpush1.msra.mxu0 0.0
    %1139 = vmatprep.subr.mxu0 0.0
    %1140 = vmatpush1.msra.mxu0 0.0
    %1141 = vmatprep.subr.mxu0 0.0
    %1142 = vmatpush1.msra.mxu0 0.0
    %1143 = vmatprep.subr.mxu0 0.0
    %1144 = vmatpush1.msra.mxu0 0.0
    %1145 = vmatprep.subr.mxu0 0.0
    %1146 = vmatpush1.msra.mxu0 0.0
    %1147 = vmatprep.subr.mxu0 0.0
    %1148 = vmatpush1.msra.mxu0 0.0
    %1149 = vmatprep.subr.mxu0 0.0
    %1150 = vmatpush1.msra.mxu0 0.0
    %v1151 = vand.u32 %v71, 4294901760
    %1152 = vmatprep.subr.mxu0 %v1151
    %v1153 = vand.u32 %v68, 4294901760
    %1154 = vmatpush1.msra.mxu0 %v1153
    %v1155 = vand.u32 %v45, 4294901760
    %1156 = vmatprep.subr.mxu0 %v1155
    %v1157 = vand.u32 %v44, 4294901760
    %1158 = vmatpush1.msra.mxu0 %v1157
    %v1159 = vand.u32 %v41, 4294901760
    %1160 = vmatprep.subr.mxu0 %v1159
    %v1161 = vand.u32 %v40, 4294901760
    %1162 = vmatpush1.msra.mxu0 %v1161
    %v1163 = vand.u32 %v37, 4294901760
    %1164 = vmatprep.subr.mxu0 %v1163
    %v1165 = vand.u32 %v36, 4294901760
    %1166 = vmatpush1.msra.mxu0 %v1165
    %v1167 = vand.u32 %v33, 4294901760
    %1168 = vmatprep.subr.mxu0 %v1167
    %v1169 = vand.u32 %v32, 4294901760
    %1170 = vmatpush1.msra.mxu0 %v1169
    %1171 = vmatprep.subr.mxu0 0.0
    %1172 = vmatpush2.msra.mxu0 0.0
    %1173 = vmatprep.subr.mxu0 0.0
    %1174 = vmatpush2.msra.mxu0 0.0
    %1175 = vmatprep.subr.mxu0 0.0
    %1176 = vmatpush2.msra.mxu0 0.0
    %1177 = vmatprep.subr.mxu0 0.0
    %1178 = vmatpush2.msra.mxu0 0.0
    %1179 = vmatprep.subr.mxu0 0.0
    %1180 = vmatpush2.msra.mxu0 0.0
    %1181 = vmatprep.subr.mxu0 0.0
    %1182 = vmatpush2.msra.mxu0 0.0
    %1183 = vmatprep.subr.mxu0 0.0
    %1184 = vmatpush2.msra.mxu0 0.0
    %1185 = vmatprep.subr.mxu0 0.0
    %1186 = vmatpush2.msra.mxu0 0.0
    %1187 = vmatprep.subr.mxu0 0.0
    %1188 = vmatpush2.msra.mxu0 0.0
    %1189 = vmatprep.subr.mxu0 0.0
    %1190 = vmatpush2.msra.mxu0 0.0
    %1191 = vmatprep.subr.mxu0 0.0
    %1192 = vmatpush2.msra.mxu0 0.0
    %1193 = vmatprep.subr.mxu0 0.0
    %1194 = vmatpush2.msra.mxu0 0.0
    %1195 = vmatprep.subr.mxu0 0.0
    %1196 = vmatpush2.msra.mxu0 0.0
    %1197 = vmatprep.subr.mxu0 0.0
    %1198 = vmatpush2.msra.mxu0 0.0
    %1199 = vmatprep.subr.mxu0 0.0
    %1200 = vmatpush2.msra.mxu0 0.0
    %1201 = vmatprep.subr.mxu0 0.0
    %1202 = vmatpush2.msra.mxu0 0.0
    %1203 = vmatprep.mubr.f32.mxu0 0.0
    %v1204 = vand.u32 %v58, 4294901760
    %1205 = vmatmul.mubr.f32.gmra.mxu0 %v1204
    %v1206 = vpop.f32.mrf.mxu0
    %v1207 = vadd.f32 %v1125, %v1206
    %v1208 = vpop.f32.mrf.mxu0
    %v1209 = vadd.f32 %v1127, %v1208
    %1210 = vdwg.mxu0
    %v1211 = vxor.u32 %v638, 2147483648
    %v1212 = vxor.u32 %v640, 2147483648
    %v1213 = vxor.u32 %v1207, 2147483648
    %v1214 = vxor.u32 %v1209, 2147483648
    %v1215 = vmul.f32 %v1211, 1.442695
    %v1216 = vpow.pop %v1215
    %v1217 = vmul.f32 %v1212, 1.442695
    %v1218 = vpow.pop %v1217
    %v1219 = vmul.f32 %v1213, 1.442695
    %v1220 = vpow.pop %v1219
    %v1221 = vmul.f32 %v1214, 1.442695
    %v1222 = vpow.pop %v1221
    %v1223 = vadd.f32 %v1216, 1.0
    %v1224 = vadd.f32 %v1218, 1.0
    %v1225 = vadd.f32 %v1220, 1.0
    %v1226 = vadd.f32 %v1222, 1.0
    %v1227 = vrcp.pop %v1223
    %v1228 = vmul.f32 1.0, %v1227
    %v1229 = vrcp.pop %v1224
    %v1230 = vmul.f32 1.0, %v1229
    %v1231 = vrcp.pop %v1225
    %v1232 = vmul.f32 1.0, %v1231
    %v1233 = vrcp.pop %v1226
    %v1234 = vmul.f32 1.0, %v1233
    %1235 = vst [vmem:[#allocation5] sm:$0xff] %v1228
    %1236 = vst [vmem:[#allocation5 + $0x8] sm:$0xff] %v1230
    %1237 = vst [vmem:[#allocation5 + $0x10] sm:$0xff] %v1232
    %1238 = vst [vmem:[#allocation5 + $0x18] sm:$0xff] %v1234
    // Predicated region
    $region18: #{tpu_custom_call.1} parent=1 // pred_check
      _
    $region19: #{tpu_custom_call.1} parent=1 // pred_check_branch
      %1240 = sbr.rel (0) target = $region21
    $region20: #{tpu_custom_call.1} parent=1 // pred_region
      %s1242 = ssub.s32 512, 512
      %1243 = vsyncadd [#allocation4], %s1242
      %s1245 = sshll.u32 [#allocation5], 4
      %s1246 = int_to_ptr.vmem [resolvable:$true] %s1245
      %1248 = dma.vmem_to_hbm [thread:$0]  %s1246, 512, %s3, [#allocation4]
    $region21: #{tpu_custom_call.1} parent=1 // pred_fallthru
      _
    // Predicated region
    $region22: #{tpu_custom_call.1} parent=1 // pred_check
      _
    $region23: #{tpu_custom_call.1} parent=1 // pred_check_branch
      %1250 = sbr.rel (0) target = $region25
    $region24: #{tpu_custom_call.1} parent=1 // pred_region
      %1251 = dma.done [#allocation4], 512
    $region25: #{tpu_custom_call.1} parent=1 // pred_fallthru
      _
    %1252 = vsyncpa [#allocation3], 1
    %1253 = vsyncpa [#allocation4], 1

</llo_original>
